<compile_context>
chip_gen: v7x
topology: tpu7x:2x2x1
jax: 0.10.0
libtpu: 0.0.40
codegen_flags: <defaults>
</compile_context>

<pallas_src>
import jax
import jax.numpy as jnp
import numpy as np
from jax import lax
from jax.experimental import pallas as pl
from jax.experimental.pallas import tpu as pltpu

BINS = 10
LOSS_WEIGHT = 1.0
LANES = 128
CHUNK = 8                    # one f32 vreg worth of rows per inner-loop step
OUT_ROWS = 24                # 10 ge-counts + 10 ge-bce partial rows, padded to mult. of 8
MAX_TILE_ROWS = 2048         # 2048*128*4B = 1 MiB per input block (3 inputs x 2 buffers ~ 6 MiB)


def _cdiv(a, b):
    return -(-a // b)


def _round_up(a, b):
    return _cdiv(a, b) * b


def _elem_stats(pred, target, lw, row_mask):
    """Per-element g*BINS, valid-mask-as-f32 and valid-masked BCE (NaN-safe)."""
    pred = pred.astype(jnp.float32)
    target = target.astype(jnp.float32)
    valid = lw > 0
    if row_mask is not None:
        valid = valid & row_mask
    # Stable sigmoid and BCE-with-logits sharing a single exp(-|x|) (EUP).
    e = jnp.exp(-jnp.abs(pred))
    sig = jnp.where(pred >= 0.0, 1.0, e) / (1.0 + e)
    gs = jnp.abs(sig - target) * float(BINS)                   # g * 10
    bce = jnp.maximum(pred, 0.0) - pred * target + jnp.log1p(e)
    vm = jnp.where(valid, 1.0, 0.0)
    vbce = jnp.where(valid, bce, 0.0)                          # where() blocks NaN garbage
    return gs, vm, vbce


def _threshold_terms(gs, vm, vbce):
    """Cumulative >=-threshold terms.

    terms[k]        : 1 for valid elements with g*BINS >= k   (k=0 is unconditional)
    terms[BINS + k] : bce for valid elements with g*BINS >= k
    Per-bin stats are recovered by differencing in the JAX combine.
    """
    cnt = [vm]
    bce = [vbce]
    for k in range(1, BINS):
        sel = gs >= float(k)
        cnt.append(jnp.where(sel, vm, 0.0))
        bce.append(jnp.where(sel, vbce, 0.0))
    return cnt + bce


def _make_kernel(rows_total, tile_rows, needs_row_mask):
    """rows_total / tile_rows are static; the kernel closes over them."""
    use_chunks = tile_rows > CHUNK and tile_rows % CHUNK == 0

    def kernel(pred_ref, target_ref, lw_ref, out_ref):
        row_base = pl.program_id(0) * tile_rows          # first global row of this tile
        rows_here = rows_total - row_base                # valid rows remaining (traced scalar)

        def row_mask(shape, start):
            if not needs_row_mask:
                return None
            iota = lax.broadcasted_iota(jnp.int32, shape, 0)
            return iota < (rows_here - start)

        if use_chunks:
            zeros = jnp.zeros((CHUNK, LANES), jnp.float32)
            init = tuple(zeros for _ in range(2 * BINS))

            def body(c, acc):
                base = pl.multiple_of(c * CHUNK, CHUNK)
                sl = (pl.ds(base, CHUNK), slice(None))
                gs, vm, vbce = _elem_stats(
                    pred_ref[sl], target_ref[sl], lw_ref[sl],
                    row_mask((CHUNK, LANES), base))
                terms = _threshold_terms(gs, vm, vbce)
                return tuple(a + t for a, t in zip(acc, terms))

            acc = lax.fori_loop(0, tile_rows // CHUNK, body, init, unroll=2)
        else:
            gs, vm, vbce = _elem_stats(
                pred_ref[...], target_ref[...], lw_ref[...],
                row_mask((tile_rows, LANES), 0))
            acc = _threshold_terms(gs, vm, vbce)

        # Sublane-only partial reductions; lane-dense (24, 128) output block.
        rows = [jnp.sum(a, axis=0, keepdims=True) for a in acc]      # 2*BINS x (1, 128)
        rows.append(jnp.zeros((OUT_ROWS - 2 * BINS, LANES), jnp.float32))
        out_ref[...] = jnp.concatenate(rows, axis=0)[None]

    return kernel


@jax.jit
def ghmc_loss(pred, target, label_weight):
    n = pred.size                                   # static under jit
    rows = max(_cdiv(n, LANES), 1)
    padded = rows * LANES

    def prep(x):
        flat = jnp.ravel(x)
        if padded != n:                             # lane-pad only when needed; 0 => invalid
            flat = jnp.pad(flat, (0, padded - n))
        return flat.reshape(rows, LANES)

    pred2, target2, lw2 = prep(pred), prep(target), prep(label_weight)

    if rows < 2 * CHUNK:
        tile_rows, num_tiles = rows, 1              # block == full array (any row count OK)
    else:
        # >=2 parallel tiles (v7x dual TC), rows per tile a multiple of 8, VMEM-capped.
        tile_rows = min(MAX_TILE_ROWS, _round_up(_cdiv(rows, 2), CHUNK))
        num_tiles = _cdiv(rows, tile_rows)
    needs_row_mask = num_tiles * tile_rows > rows   # partial final tile reads OOB garbage

    kernel = _make_kernel(rows, tile_rows, needs_row_mask)
    in_spec = pl.BlockSpec((tile_rows, LANES), lambda t: (t, 0))
    parts = pl.pallas_call(
        kernel,
        out_shape=jax.ShapeDtypeStruct((num_tiles, OUT_ROWS, LANES), jnp.float32),
        grid=(num_tiles,),
        in_specs=[in_spec, in_spec, in_spec],
        out_specs=pl.BlockSpec((1, OUT_ROWS, LANES), lambda t: (t, 0, 0)),
        compiler_params=pltpu.CompilerParams(
            dimension_semantics=("parallel",),
            vmem_limit_bytes=32 * 1024 * 1024),
    )(pred2, target2, lw2)

    # ---- tiny combine in plain JAX: difference thresholds -> bins -> loss ----
    s = jnp.sum(parts, axis=(0, 2))                 # (OUT_ROWS,)
    ge = s[:BINS]                                   # ge[k] = # valid with g*10 >= k (ge[0] = # valid)
    bce_ge = s[BINS:2 * BINS]                       # same but summing BCE
    zero = jnp.zeros((1,), jnp.float32)
    counts = ge - jnp.concatenate([ge[1:], zero])       # per-bin valid counts (exact integers)
    bce_bin = bce_ge - jnp.concatenate([bce_ge[1:], zero])

    tot = jnp.maximum(ge[0], 1.0)
    has = counts > 0.0
    n_nonempty = jnp.sum(has.astype(jnp.float32))
    w_bin = jnp.where(has, tot / jnp.maximum(counts, 1.0), 0.0)
    w_bin = w_bin / jnp.maximum(n_nonempty, 1.0)
    return jnp.sum(w_bin * bce_bin) / tot * LOSS_WEIGHT


def ghmc_reference(pred, target, label_weight):
    """Pure-JAX reference mirroring the PyTorch forward (momentum=0)."""
    pred = pred.astype(jnp.float32)
    target = target.astype(jnp.float32)
    lw = label_weight.astype(jnp.float32)
    edges = [float(x) / BINS for x in range(BINS + 1)]
    edges[-1] += 1e-06
    g = jnp.abs(jax.nn.sigmoid(pred) - target)
    valid = lw > 0
    tot = jnp.maximum(jnp.sum(valid.astype(jnp.float32)), 1.0)
    weights = jnp.zeros_like(pred)
    n = 0.0
    for i in range(BINS):
        inds = (g >= edges[i]) & (g < edges[i + 1]) & valid
        num = jnp.sum(inds.astype(jnp.float32))
        has = num > 0
        weights = jnp.where(inds, jnp.where(has, tot / jnp.maximum(num, 1.0), 0.0), weights)
        n = n + jnp.where(has, 1.0, 0.0)
    weights = jnp.where(n > 0, weights / jnp.maximum(n, 1.0), weights)
    bce = (jnp.maximum(pred, 0.0) - pred * target
           + jnp.log1p(jnp.exp(-jnp.abs(pred))))
    return jnp.sum(weights * bce) / tot * LOSS_WEIGHT


if __name__ == "__main__":
    key = jax.random.PRNGKey(0)
    k1, k2, k3 = jax.random.split(key, 3)

    batch_num, class_num = 8, 32
    pred = jax.random.normal(k1, (batch_num, class_num), dtype=jnp.float32) * 2.0
    target = (jax.random.uniform(k2, (batch_num, class_num)) > 0.7).astype(jnp.float32)
    label_weight = (jax.random.uniform(k3, (batch_num, class_num)) > 0.1).astype(jnp.float32)

    loss = ghmc_loss(pred, target, label_weight)
    jax.block_until_ready(loss)

    ref = ghmc_reference(pred, target, label_weight)
    np.testing.assert_allclose(np.asarray(loss), np.asarray(ref), rtol=2e-4, atol=2e-5)

    print("KERNEL_OK")
</pallas_src>

<mosaic_0001>
module attributes {stable_mosaic.version = 11 : i64} {
  func.func @kernel(%arg0: i32, %arg1: memref<2x128xf32, #tpu.memory_space<vmem>>, %arg2: memref<2x128xf32, #tpu.memory_space<vmem>>, %arg3: memref<2x128xf32, #tpu.memory_space<vmem>>, %arg4: memref<1x24x128xf32, #tpu.memory_space<vmem>>) attributes {dimension_semantics = [#tpu.dimension_semantics<parallel>], iteration_bounds = array<i64: 1>, scalar_prefetch = 0 : i64, scratch_operands = 0 : i64, tpu.core_type = #tpu.core_type<tc>, window_params = [{transform_indices = @transform_0, window_bounds = array<i64: 2, 128>}, {transform_indices = @transform_1, window_bounds = array<i64: 2, 128>}, {transform_indices = @transform_2, window_bounds = array<i64: 2, 128>}, {transform_indices = @transform_3, window_bounds = array<i64: 1, 24, 128>}]} {
    %c0 = arith.constant 0 : index
    %c0_0 = arith.constant 0 : index
    %0 = vector.load %arg1[%c0, %c0_0] : memref<2x128xf32, #tpu.memory_space<vmem>>, vector<2x128xf32>
    %c0_1 = arith.constant 0 : index
    %c0_2 = arith.constant 0 : index
    %1 = vector.load %arg2[%c0_1, %c0_2] : memref<2x128xf32, #tpu.memory_space<vmem>>, vector<2x128xf32>
    %c0_3 = arith.constant 0 : index
    %c0_4 = arith.constant 0 : index
    %2 = vector.load %arg3[%c0_3, %c0_4] : memref<2x128xf32, #tpu.memory_space<vmem>>, vector<2x128xf32>
    %cst = arith.constant 0.000000e+00 : f32
    %3 = vector.broadcast %cst : f32 to vector<2x128xf32>
    %4 = arith.cmpf ogt, %2, %3 : vector<2x128xf32>
    %5 = math.absf %0 : vector<2x128xf32>
    %cst_5 = arith.constant 0.000000e+00 : f32
    %6 = vector.broadcast %cst_5 : f32 to vector<2x128xf32>
    %7 = arith.subf %6, %5 : vector<2x128xf32>
    %8 = math.exp %7 : vector<2x128xf32>
    %cst_6 = arith.constant 0.000000e+00 : f32
    %9 = vector.broadcast %cst_6 : f32 to vector<2x128xf32>
    %10 = arith.cmpf oge, %0, %9 : vector<2x128xf32>
    %cst_7 = arith.constant 1.000000e+00 : f32
    %11 = vector.broadcast %cst_7 : f32 to vector<2x128xf32>
    %12 = arith.select %10, %11, %8 : vector<2x128xi1>, vector<2x128xf32>
    %cst_8 = arith.constant 1.000000e+00 : f32
    %13 = vector.broadcast %cst_8 : f32 to vector<2x128xf32>
    %14 = arith.addf %13, %8 : vector<2x128xf32>
    %15 = arith.divf %12, %14 : vector<2x128xf32>
    %16 = arith.subf %15, %1 : vector<2x128xf32>
    %17 = math.absf %16 : vector<2x128xf32>
    %cst_9 = arith.constant 1.000000e+01 : f32
    %18 = vector.broadcast %cst_9 : f32 to vector<2x128xf32>
    %19 = arith.mulf %17, %18 : vector<2x128xf32>
    %cst_10 = arith.constant 0.000000e+00 : f32
    %20 = vector.broadcast %cst_10 : f32 to vector<2x128xf32>
    %21 = arith.maximumf %0, %20 : vector<2x128xf32>
    %22 = arith.mulf %0, %1 : vector<2x128xf32>
    %23 = arith.subf %21, %22 : vector<2x128xf32>
    %24 = math.log1p %8 : vector<2x128xf32>
    %25 = arith.addf %23, %24 : vector<2x128xf32>
    %cst_11 = arith.constant 1.000000e+00 : f32
    %cst_12 = arith.constant 0.000000e+00 : f32
    %26 = vector.broadcast %cst_11 : f32 to vector<2x128xf32>
    %27 = vector.broadcast %cst_12 : f32 to vector<2x128xf32>
    %28 = arith.select %4, %26, %27 : vector<2x128xi1>, vector<2x128xf32>
    %cst_13 = arith.constant 0.000000e+00 : f32
    %29 = vector.broadcast %cst_13 : f32 to vector<2x128xf32>
    %30 = arith.select %4, %25, %29 : vector<2x128xi1>, vector<2x128xf32>
    %cst_14 = arith.constant 1.000000e+00 : f32
    %31 = vector.broadcast %cst_14 : f32 to vector<2x128xf32>
    %32 = arith.cmpf oge, %19, %31 : vector<2x128xf32>
    %cst_15 = arith.constant 0.000000e+00 : f32
    %33 = vector.broadcast %cst_15 : f32 to vector<2x128xf32>
    %34 = arith.select %32, %28, %33 : vector<2x128xi1>, vector<2x128xf32>
    %cst_16 = arith.constant 0.000000e+00 : f32
    %35 = vector.broadcast %cst_16 : f32 to vector<2x128xf32>
    %36 = arith.select %32, %30, %35 : vector<2x128xi1>, vector<2x128xf32>
    %cst_17 = arith.constant 2.000000e+00 : f32
    %37 = vector.broadcast %cst_17 : f32 to vector<2x128xf32>
    %38 = arith.cmpf oge, %19, %37 : vector<2x128xf32>
    %cst_18 = arith.constant 0.000000e+00 : f32
    %39 = vector.broadcast %cst_18 : f32 to vector<2x128xf32>
    %40 = arith.select %38, %28, %39 : vector<2x128xi1>, vector<2x128xf32>
    %cst_19 = arith.constant 0.000000e+00 : f32
    %41 = vector.broadcast %cst_19 : f32 to vector<2x128xf32>
    %42 = arith.select %38, %30, %41 : vector<2x128xi1>, vector<2x128xf32>
    %cst_20 = arith.constant 3.000000e+00 : f32
    %43 = vector.broadcast %cst_20 : f32 to vector<2x128xf32>
    %44 = arith.cmpf oge, %19, %43 : vector<2x128xf32>
    %cst_21 = arith.constant 0.000000e+00 : f32
    %45 = vector.broadcast %cst_21 : f32 to vector<2x128xf32>
    %46 = arith.select %44, %28, %45 : vector<2x128xi1>, vector<2x128xf32>
    %cst_22 = arith.constant 0.000000e+00 : f32
    %47 = vector.broadcast %cst_22 : f32 to vector<2x128xf32>
    %48 = arith.select %44, %30, %47 : vector<2x128xi1>, vector<2x128xf32>
    %cst_23 = arith.constant 4.000000e+00 : f32
    %49 = vector.broadcast %cst_23 : f32 to vector<2x128xf32>
    %50 = arith.cmpf oge, %19, %49 : vector<2x128xf32>
    %cst_24 = arith.constant 0.000000e+00 : f32
    %51 = vector.broadcast %cst_24 : f32 to vector<2x128xf32>
    %52 = arith.select %50, %28, %51 : vector<2x128xi1>, vector<2x128xf32>
    %cst_25 = arith.constant 0.000000e+00 : f32
    %53 = vector.broadcast %cst_25 : f32 to vector<2x128xf32>
    %54 = arith.select %50, %30, %53 : vector<2x128xi1>, vector<2x128xf32>
    %cst_26 = arith.constant 5.000000e+00 : f32
    %55 = vector.broadcast %cst_26 : f32 to vector<2x128xf32>
    %56 = arith.cmpf oge, %19, %55 : vector<2x128xf32>
    %cst_27 = arith.constant 0.000000e+00 : f32
    %57 = vector.broadcast %cst_27 : f32 to vector<2x128xf32>
    %58 = arith.select %56, %28, %57 : vector<2x128xi1>, vector<2x128xf32>
    %cst_28 = arith.constant 0.000000e+00 : f32
    %59 = vector.broadcast %cst_28 : f32 to vector<2x128xf32>
    %60 = arith.select %56, %30, %59 : vector<2x128xi1>, vector<2x128xf32>
    %cst_29 = arith.constant 6.000000e+00 : f32
    %61 = vector.broadcast %cst_29 : f32 to vector<2x128xf32>
    %62 = arith.cmpf oge, %19, %61 : vector<2x128xf32>
    %cst_30 = arith.constant 0.000000e+00 : f32
    %63 = vector.broadcast %cst_30 : f32 to vector<2x128xf32>
    %64 = arith.select %62, %28, %63 : vector<2x128xi1>, vector<2x128xf32>
    %cst_31 = arith.constant 0.000000e+00 : f32
    %65 = vector.broadcast %cst_31 : f32 to vector<2x128xf32>
    %66 = arith.select %62, %30, %65 : vector<2x128xi1>, vector<2x128xf32>
    %cst_32 = arith.constant 7.000000e+00 : f32
    %67 = vector.broadcast %cst_32 : f32 to vector<2x128xf32>
    %68 = arith.cmpf oge, %19, %67 : vector<2x128xf32>
    %cst_33 = arith.constant 0.000000e+00 : f32
    %69 = vector.broadcast %cst_33 : f32 to vector<2x128xf32>
    %70 = arith.select %68, %28, %69 : vector<2x128xi1>, vector<2x128xf32>
    %cst_34 = arith.constant 0.000000e+00 : f32
    %71 = vector.broadcast %cst_34 : f32 to vector<2x128xf32>
    %72 = arith.select %68, %30, %71 : vector<2x128xi1>, vector<2x128xf32>
    %cst_35 = arith.constant 8.000000e+00 : f32
    %73 = vector.broadcast %cst_35 : f32 to vector<2x128xf32>
    %74 = arith.cmpf oge, %19, %73 : vector<2x128xf32>
    %cst_36 = arith.constant 0.000000e+00 : f32
    %75 = vector.broadcast %cst_36 : f32 to vector<2x128xf32>
    %76 = arith.select %74, %28, %75 : vector<2x128xi1>, vector<2x128xf32>
    %cst_37 = arith.constant 0.000000e+00 : f32
    %77 = vector.broadcast %cst_37 : f32 to vector<2x128xf32>
    %78 = arith.select %74, %30, %77 : vector<2x128xi1>, vector<2x128xf32>
    %cst_38 = arith.constant 9.000000e+00 : f32
    %79 = vector.broadcast %cst_38 : f32 to vector<2x128xf32>
    %80 = arith.cmpf oge, %19, %79 : vector<2x128xf32>
    %cst_39 = arith.constant 0.000000e+00 : f32
    %81 = vector.broadcast %cst_39 : f32 to vector<2x128xf32>
    %82 = arith.select %80, %28, %81 : vector<2x128xi1>, vector<2x128xf32>
    %cst_40 = arith.constant 0.000000e+00 : f32
    %83 = vector.broadcast %cst_40 : f32 to vector<2x128xf32>
    %84 = arith.select %80, %30, %83 : vector<2x128xi1>, vector<2x128xf32>
    %cst_41 = arith.constant dense<0.000000e+00> : vector<128xf32>
    %85 = vector.multi_reduction <add>, %28, %cst_41 [0] : vector<2x128xf32> to vector<128xf32>
    %86 = vector.shape_cast %85 : vector<128xf32> to vector<1x128xf32>
    %cst_42 = arith.constant dense<0.000000e+00> : vector<128xf32>
    %87 = vector.multi_reduction <add>, %34, %cst_42 [0] : vector<2x128xf32> to vector<128xf32>
    %88 = vector.shape_cast %87 : vector<128xf32> to vector<1x128xf32>
    %cst_43 = arith.constant dense<0.000000e+00> : vector<128xf32>
    %89 = vector.multi_reduction <add>, %40, %cst_43 [0] : vector<2x128xf32> to vector<128xf32>
    %90 = vector.shape_cast %89 : vector<128xf32> to vector<1x128xf32>
    %cst_44 = arith.constant dense<0.000000e+00> : vector<128xf32>
    %91 = vector.multi_reduction <add>, %46, %cst_44 [0] : vector<2x128xf32> to vector<128xf32>
    %92 = vector.shape_cast %91 : vector<128xf32> to vector<1x128xf32>
    %cst_45 = arith.constant dense<0.000000e+00> : vector<128xf32>
    %93 = vector.multi_reduction <add>, %52, %cst_45 [0] : vector<2x128xf32> to vector<128xf32>
    %94 = vector.shape_cast %93 : vector<128xf32> to vector<1x128xf32>
    %cst_46 = arith.constant dense<0.000000e+00> : vector<128xf32>
    %95 = vector.multi_reduction <add>, %58, %cst_46 [0] : vector<2x128xf32> to vector<128xf32>
    %96 = vector.shape_cast %95 : vector<128xf32> to vector<1x128xf32>
    %cst_47 = arith.constant dense<0.000000e+00> : vector<128xf32>
    %97 = vector.multi_reduction <add>, %64, %cst_47 [0] : vector<2x128xf32> to vector<128xf32>
    %98 = vector.shape_cast %97 : vector<128xf32> to vector<1x128xf32>
    %cst_48 = arith.constant dense<0.000000e+00> : vector<128xf32>
    %99 = vector.multi_reduction <add>, %70, %cst_48 [0] : vector<2x128xf32> to vector<128xf32>
    %100 = vector.shape_cast %99 : vector<128xf32> to vector<1x128xf32>
    %cst_49 = arith.constant dense<0.000000e+00> : vector<128xf32>
    %101 = vector.multi_reduction <add>, %76, %cst_49 [0] : vector<2x128xf32> to vector<128xf32>
    %102 = vector.shape_cast %101 : vector<128xf32> to vector<1x128xf32>
    %cst_50 = arith.constant dense<0.000000e+00> : vector<128xf32>
    %103 = vector.multi_reduction <add>, %82, %cst_50 [0] : vector<2x128xf32> to vector<128xf32>
    %104 = vector.shape_cast %103 : vector<128xf32> to vector<1x128xf32>
    %cst_51 = arith.constant dense<0.000000e+00> : vector<128xf32>
    %105 = vector.multi_reduction <add>, %30, %cst_51 [0] : vector<2x128xf32> to vector<128xf32>
    %106 = vector.shape_cast %105 : vector<128xf32> to vector<1x128xf32>
    %cst_52 = arith.constant dense<0.000000e+00> : vector<128xf32>
    %107 = vector.multi_reduction <add>, %36, %cst_52 [0] : vector<2x128xf32> to vector<128xf32>
    %108 = vector.shape_cast %107 : vector<128xf32> to vector<1x128xf32>
    %cst_53 = arith.constant dense<0.000000e+00> : vector<128xf32>
    %109 = vector.multi_reduction <add>, %42, %cst_53 [0] : vector<2x128xf32> to vector<128xf32>
    %110 = vector.shape_cast %109 : vector<128xf32> to vector<1x128xf32>
    %cst_54 = arith.constant dense<0.000000e+00> : vector<128xf32>
    %111 = vector.multi_reduction <add>, %48, %cst_54 [0] : vector<2x128xf32> to vector<128xf32>
    %112 = vector.shape_cast %111 : vector<128xf32> to vector<1x128xf32>
    %cst_55 = arith.constant dense<0.000000e+00> : vector<128xf32>
    %113 = vector.multi_reduction <add>, %54, %cst_55 [0] : vector<2x128xf32> to vector<128xf32>
    %114 = vector.shape_cast %113 : vector<128xf32> to vector<1x128xf32>
    %cst_56 = arith.constant dense<0.000000e+00> : vector<128xf32>
    %115 = vector.multi_reduction <add>, %60, %cst_56 [0] : vector<2x128xf32> to vector<128xf32>
    %116 = vector.shape_cast %115 : vector<128xf32> to vector<1x128xf32>
    %cst_57 = arith.constant dense<0.000000e+00> : vector<128xf32>
    %117 = vector.multi_reduction <add>, %66, %cst_57 [0] : vector<2x128xf32> to vector<128xf32>
    %118 = vector.shape_cast %117 : vector<128xf32> to vector<1x128xf32>
    %cst_58 = arith.constant dense<0.000000e+00> : vector<128xf32>
    %119 = vector.multi_reduction <add>, %72, %cst_58 [0] : vector<2x128xf32> to vector<128xf32>
    %120 = vector.shape_cast %119 : vector<128xf32> to vector<1x128xf32>
    %cst_59 = arith.constant dense<0.000000e+00> : vector<128xf32>
    %121 = vector.multi_reduction <add>, %78, %cst_59 [0] : vector<2x128xf32> to vector<128xf32>
    %122 = vector.shape_cast %121 : vector<128xf32> to vector<1x128xf32>
    %cst_60 = arith.constant dense<0.000000e+00> : vector<128xf32>
    %123 = vector.multi_reduction <add>, %84, %cst_60 [0] : vector<2x128xf32> to vector<128xf32>
    %124 = vector.shape_cast %123 : vector<128xf32> to vector<1x128xf32>
    %cst_61 = arith.constant 0.000000e+00 : f32
    %125 = vector.broadcast %cst_61 : f32 to vector<4x128xf32>
    %126 = tpu.concatenate %86, %88, %90, %92, %94, %96, %98, %100, %102, %104, %106, %108, %110, %112, %114, %116 in 0 : vector<1x128xf32>, vector<1x128xf32>, vector<1x128xf32>, vector<1x128xf32>, vector<1x128xf32>, vector<1x128xf32>, vector<1x128xf32>, vector<1x128xf32>, vector<1x128xf32>, vector<1x128xf32>, vector<1x128xf32>, vector<1x128xf32>, vector<1x128xf32>, vector<1x128xf32>, vector<1x128xf32>, vector<1x128xf32> -> vector<16x128xf32>
    %127 = tpu.concatenate %118, %120, %122, %124, %125 in 0 : vector<1x128xf32>, vector<1x128xf32>, vector<1x128xf32>, vector<1x128xf32>, vector<4x128xf32> -> vector<8x128xf32>
    %128 = tpu.concatenate %126, %127 in 0 : vector<16x128xf32>, vector<8x128xf32> -> vector<24x128xf32>
    %129 = vector.shape_cast %128 : vector<24x128xf32> to vector<1x24x128xf32>
    %c0_62 = arith.constant 0 : index
    %c0_63 = arith.constant 0 : index
    %c0_64 = arith.constant 0 : index
    %130 = vector.load %arg4[%c0_62, %c0_63, %c0_64] : memref<1x24x128xf32, #tpu.memory_space<vmem>>, vector<1x24x128xf32>
    tpu.vector_store %arg4[%c0_62, %c0_63, %c0_64], %129 {strides = array<i32>} : memref<1x24x128xf32, #tpu.memory_space<vmem>>, vector<1x24x128xf32>,
    return
  }
  func.func @transform_0(%arg0: i32) -> (i32, i32) {
    %c0_i32 = arith.constant 0 : i32
    %c0_i32_0 = arith.constant 0 : i32
    return %arg0, %c0_i32 : i32, i32
  }
  func.func @transform_1(%arg0: i32) -> (i32, i32) {
    %c0_i32 = arith.constant 0 : i32
    %c0_i32_0 = arith.constant 0 : i32
    return %arg0, %c0_i32 : i32, i32
  }
  func.func @transform_2(%arg0: i32) -> (i32, i32) {
    %c0_i32 = arith.constant 0 : i32
    %c0_i32_0 = arith.constant 0 : i32
    return %arg0, %c0_i32 : i32, i32
  }
  func.func @transform_3(%arg0: i32) -> (i32, i32, i32) {
    %c0_i32 = arith.constant 0 : i32
    %c0_i32_0 = arith.constant 0 : i32
    %c0_i32_1 = arith.constant 0 : i32
    return %arg0, %c0_i32, %c0_i32_0 : i32, i32, i32
  }
}

</mosaic_0001>

<llo_original>
// kernel: ghmc_loss.1
$region0: #{ghmc_loss.1}
  #allocation0 [shape = 'u32[]', space=smem, size = 0x4, offset = 0x4, fixed_abs, tag = 'smem constant byte address 0x4 - core index']
  #allocation1 [shape = 'u32[144,128]{1,0:T(1,128)}', space=vmem, size = 0x12000, scoped, tag = 'internal scratch']
  %s0 = inlined_call_operand.vmem [shape: f32[2,128], index: 0, kind: input, shape index: {}]
  %s1 = inlined_call_operand.vmem [shape: f32[2,128], index: 1, kind: input, shape index: {}]
  %s2 = inlined_call_operand.vmem [shape: f32[2,128], index: 2, kind: input, shape index: {}]
  %s3 = inlined_call_operand.vmem [shape: f32[1,24,128], index: 3, kind: output, shape index: {}]
  %s4 = sld [smem:[#allocation0]]
  $region22: #{ghmc_loss.1} parent=0
    _
  %s6 = ssub.s32 1, %s4
  %s7 = scalar_select 0, %s6, %s4
  // Predicated region
  $region2: #{ghmc_loss.1} parent=0 // pred_check
    _
  $region3: #{ghmc_loss.1} parent=0 // pred_check_branch
    %9 = sbr.rel (0) target = $region5
  $region4: #{ghmc_loss.1} parent=0 // pred_region
    _
  $region5: #{ghmc_loss.1} parent=0 // pred_fallthru
    _
  // Predicated region
  $region6: #{ghmc_loss.1} parent=0 // pred_check
    _
  $region7: #{ghmc_loss.1} parent=0 // pred_check_branch
    %11 = sbr.rel (0) target = $region9
  $region8: #{ghmc_loss.1} parent=0 // pred_region
    _
  $region9: #{ghmc_loss.1} parent=0 // pred_fallthru
    _
  // Predicated region
  $region10: #{ghmc_loss.1} parent=0 // pred_check
    _
  $region11: #{ghmc_loss.1} parent=0 // pred_check_branch
    %13 = sbr.rel (0) target = $region13
  $region12: #{ghmc_loss.1} parent=0 // pred_region
    _
  $region13: #{ghmc_loss.1} parent=0 // pred_fallthru
    _
  %v14 = vld [vmem:[%s0] sm:$0x3]
  %v15 = vld [vmem:[%s1] sm:$0x3]
  %v16 = vld [vmem:[%s2] sm:$0x3]
  %vm17 = vcmp.gt.f32.partialorder %v16, 0.0
  %v18 = vand.u32 2147483647, %v14
  %v19 = vsub.f32 0.0, %v18
  %v20 = vmul.f32 %v19, 1.442695
  %v21 = vpow.pop %v20
  %vm22 = vcmp.ge.f32.partialorder %v14, 0.0
  %v23 = vsel %vm22, 1.0, %v21
  %v24 = vadd.f32 %v21, 1.0
  %v25 = vrcp.pop %v24
  %v26 = vmul.f32 %v23, %v25
  %v27 = vsub.f32 %v26, %v15
  %v28 = vand.u32 2147483647, %v27
  %v29 = vmul.f32 %v28, 10.0
  %v30 = vmax.f32 %v14, 0.0
  %v31 = vmul.f32 %v14, %v15
  %v32 = vsub.f32 %v30, %v31
  %v33 = vadd.f32 %v21, 1.0
  %v34 = vlog2.pop %v33
  %v35 = vmul.f32 %v34, 0.6931472
  %v36 = vmul.f32 -0.5, %v21
  %v37 = vadd.f32 %v36, 1.0
  %v38 = vmul.f32 %v37, %v21
  %v39 = vand.u32 2147483647, %v21
  %vm40 = vcmp.lt.f32.partialorder %v39, 0.0004427343
  %v41 = vsel %vm40, %v38, %v35
  %v42 = vadd.f32 %v32, %v41
  %v43 = vsel %vm17, 1.0, 0.0
  %v44 = vsel %vm17, %v42, 0.0
  %vm45 = vcmp.ge.f32.partialorder %v29, 1.0
  %v46 = vsel %vm45, %v43, 0.0
  %v47 = vsel %vm45, %v44, 0.0
  %vm48 = vcmp.ge.f32.partialorder %v29, 2.0
  %v49 = vsel %vm48, %v43, 0.0
  %v50 = vsel %vm48, %v44, 0.0
  %vm51 = vcmp.ge.f32.partialorder %v29, 3.0
  %v52 = vsel %vm51, %v43, 0.0
  %v53 = vsel %vm51, %v44, 0.0
  %vm54 = vcmp.ge.f32.partialorder %v29, 4.0
  %v55 = vsel %vm54, %v43, 0.0
  %v56 = vsel %vm54, %v44, 0.0
  %vm57 = vcmp.ge.f32.partialorder %v29, 5.0
  %v58 = vsel %vm57, %v43, 0.0
  %v59 = vsel %vm57, %v44, 0.0
  %vm60 = vcmp.ge.f32.partialorder %v29, 6.0
  %v61 = vsel %vm60, %v43, 0.0
  %v62 = vsel %vm60, %v44, 0.0
  %vm63 = vcmp.ge.f32.partialorder %v29, 7.0
  %v64 = vsel %vm63, %v43, 0.0
  %v65 = vsel %vm63, %v44, 0.0
  %vm66 = vcmp.ge.f32.partialorder %v29, 8.0
  %v67 = vsel %vm66, %v43, 0.0
  %v68 = vsel %vm66, %v44, 0.0
  %vm69 = vcmp.ge.f32.partialorder %v29, 9.0
  %v70 = vsel %vm69, %v43, 0.0
  %v71 = vsel %vm69, %v44, 0.0
  %vm72 = vcmask 1041408
  %v73 = vsel %vm72, %v43, 0.0
  %v74 = vrot.slane %v73, 4
  %v75 = vadd.f32 %v73, %v74
  %v76 = vrot.slane %v75, 2
  %v77 = vadd.f32 %v75, %v76
  %v78 = vrot.slane %v77, 1
  %v79 = vadd.f32 %v77, %v78
  %v80 = vsel %vm72, %v46, 0.0
  %v81 = vrot.slane %v80, 4
  %v82 = vadd.f32 %v80, %v81
  %v83 = vrot.slane %v82, 2
  %v84 = vadd.f32 %v82, %v83
  %v85 = vrot.slane %v84, 1
  %v86 = vadd.f32 %v84, %v85
  %v87 = vsel %vm72, %v49, 0.0
  %v88 = vrot.slane %v87, 4
  %v89 = vadd.f32 %v87, %v88
  %v90 = vrot.slane %v89, 2
  %v91 = vadd.f32 %v89, %v90
  %v92 = vrot.slane %v91, 1
  %v93 = vadd.f32 %v91, %v92
  %v94 = vsel %vm72, %v52, 0.0
  %v95 = vrot.slane %v94, 4
  %v96 = vadd.f32 %v94, %v95
  %v97 = vrot.slane %v96, 2
  %v98 = vadd.f32 %v96, %v97
  %v99 = vrot.slane %v98, 1
  %v100 = vadd.f32 %v98, %v99
  %v101 = vsel %vm72, %v55, 0.0
  %v102 = vrot.slane %v101, 4
  %v103 = vadd.f32 %v101, %v102
  %v104 = vrot.slane %v103, 2
  %v105 = vadd.f32 %v103, %v104
  %v106 = vrot.slane %v105, 1
  %v107 = vadd.f32 %v105, %v106
  %v108 = vsel %vm72, %v58, 0.0
  %v109 = vrot.slane %v108, 4
  %v110 = vadd.f32 %v108, %v109
  %v111 = vrot.slane %v110, 2
  %v112 = vadd.f32 %v110, %v111
  %v113 = vrot.slane %v112, 1
  %v114 = vadd.f32 %v112, %v113
  %v115 = vsel %vm72, %v61, 0.0
  %v116 = vrot.slane %v115, 4
  %v117 = vadd.f32 %v115, %v116
  %v118 = vrot.slane %v117, 2
  %v119 = vadd.f32 %v117, %v118
  %v120 = vrot.slane %v119, 1
  %v121 = vadd.f32 %v119, %v120
  %v122 = vsel %vm72, %v64, 0.0
  %v123 = vrot.slane %v122, 4
  %v124 = vadd.f32 %v122, %v123
  %v125 = vrot.slane %v124, 2
  %v126 = vadd.f32 %v124, %v125
  %v127 = vrot.slane %v126, 1
  %v128 = vadd.f32 %v126, %v127
  %v129 = vsel %vm72, %v67, 0.0
  %v130 = vrot.slane %v129, 4
  %v131 = vadd.f32 %v129, %v130
  %v132 = vrot.slane %v131, 2
  %v133 = vadd.f32 %v131, %v132
  %v134 = vrot.slane %v133, 1
  %v135 = vadd.f32 %v133, %v134
  %v136 = vsel %vm72, %v70, 0.0
  %v137 = vrot.slane %v136, 4
  %v138 = vadd.f32 %v136, %v137
  %v139 = vrot.slane %v138, 2
  %v140 = vadd.f32 %v138, %v139
  %v141 = vrot.slane %v140, 1
  %v142 = vadd.f32 %v140, %v141
  %v143 = vsel %vm72, %v44, 0.0
  %v144 = vrot.slane %v143, 4
  %v145 = vadd.f32 %v143, %v144
  %v146 = vrot.slane %v145, 2
  %v147 = vadd.f32 %v145, %v146
  %v148 = vrot.slane %v147, 1
  %v149 = vadd.f32 %v147, %v148
  %v150 = vsel %vm72, %v47, 0.0
  %v151 = vrot.slane %v150, 4
  %v152 = vadd.f32 %v150, %v151
  %v153 = vrot.slane %v152, 2
  %v154 = vadd.f32 %v152, %v153
  %v155 = vrot.slane %v154, 1
  %v156 = vadd.f32 %v154, %v155
  %v157 = vsel %vm72, %v50, 0.0
  %v158 = vrot.slane %v157, 4
  %v159 = vadd.f32 %v157, %v158
  %v160 = vrot.slane %v159, 2
  %v161 = vadd.f32 %v159, %v160
  %v162 = vrot.slane %v161, 1
  %v163 = vadd.f32 %v161, %v162
  %v164 = vsel %vm72, %v53, 0.0
  %v165 = vrot.slane %v164, 4
  %v166 = vadd.f32 %v164, %v165
  %v167 = vrot.slane %v166, 2
  %v168 = vadd.f32 %v166, %v167
  %v169 = vrot.slane %v168, 1
  %v170 = vadd.f32 %v168, %v169
  %v171 = vsel %vm72, %v56, 0.0
  %v172 = vrot.slane %v171, 4
  %v173 = vadd.f32 %v171, %v172
  %v174 = vrot.slane %v173, 2
  %v175 = vadd.f32 %v173, %v174
  %v176 = vrot.slane %v175, 1
  %v177 = vadd.f32 %v175, %v176
  %v178 = vsel %vm72, %v59, 0.0
  %v179 = vrot.slane %v178, 4
  %v180 = vadd.f32 %v178, %v179
  %v181 = vrot.slane %v180, 2
  %v182 = vadd.f32 %v180, %v181
  %v183 = vrot.slane %v182, 1
  %v184 = vadd.f32 %v182, %v183
  %v185 = vsel %vm72, %v62, 0.0
  %v186 = vrot.slane %v185, 4
  %v187 = vadd.f32 %v185, %v186
  %v188 = vrot.slane %v187, 2
  %v189 = vadd.f32 %v187, %v188
  %v190 = vrot.slane %v189, 1
  %v191 = vadd.f32 %v189, %v190
  %v192 = vsel %vm72, %v65, 0.0
  %v193 = vrot.slane %v192, 4
  %v194 = vadd.f32 %v192, %v193
  %v195 = vrot.slane %v194, 2
  %v196 = vadd.f32 %v194, %v195
  %v197 = vrot.slane %v196, 1
  %v198 = vadd.f32 %v196, %v197
  %v199 = vsel %vm72, %v68, 0.0
  %v200 = vrot.slane %v199, 4
  %v201 = vadd.f32 %v199, %v200
  %v202 = vrot.slane %v201, 2
  %v203 = vadd.f32 %v201, %v202
  %v204 = vrot.slane %v203, 1
  %v205 = vadd.f32 %v203, %v204
  %v206 = vsel %vm72, %v71, 0.0
  %v207 = vrot.slane %v206, 4
  %v208 = vadd.f32 %v206, %v207
  %v209 = vrot.slane %v208, 2
  %v210 = vadd.f32 %v208, %v209
  %v211 = vrot.slane %v210, 1
  %v212 = vadd.f32 %v210, %v211
  %vm213 = vcmask 1040384
  %v214 = vsel %vm213, %v79, %v86
  %v215 = vsel %vm72, %v214, %v93
  %vm216 = vcmask 1042432
  %v217 = vsel %vm216, %v215, %v100
  %vm218 = vcmask 1043456
  %v219 = vsel %vm218, %v217, %v107
  %vm220 = vcmask 1044480
  %v221 = vsel %vm220, %v219, %v114
  %vm222 = vcmask 1045504
  %v223 = vsel %vm222, %v221, %v121
  %vm224 = vcmask 1046528
  %v225 = vsel %vm224, %v223, %v128
  %v226 = vsel %vm213, %v135, %v142
  %v227 = vsel %vm72, %v226, %v149
  %v228 = vsel %vm216, %v227, %v156
  %v229 = vsel %vm218, %v228, %v163
  %v230 = vsel %vm220, %v229, %v170
  %v231 = vsel %vm222, %v230, %v177
  %v232 = vsel %vm224, %v231, %v184
  %v233 = vsel %vm213, %v191, %v198
  %v234 = vsel %vm72, %v233, %v205
  %v235 = vsel %vm216, %v234, %v212
  %v236 = vsel %vm218, %v235, 0.0
  %237 = vst [vmem:[%s3] sm:$0xff] %v225
  %238 = vst [vmem:[%s3 + $0x8] sm:$0xff] %v232
  %239 = vst [vmem:[%s3 + $0x10] sm:$0xff] %v236
  // Predicated region
  $region14: #{ghmc_loss.1} parent=0 // pred_check
    _
  $region15: #{ghmc_loss.1} parent=0 // pred_check_branch
    %241 = sbr.rel (0) target = $region17
  $region16: #{ghmc_loss.1} parent=0 // pred_region
    _
  $region17: #{ghmc_loss.1} parent=0 // pred_fallthru
    _
  // Predicated region
  $region18: #{ghmc_loss.1} parent=0 // pred_check
    _
  $region19: #{ghmc_loss.1} parent=0 // pred_check_branch
    %243 = sbr.rel (0) target = $region21
  $region20: #{ghmc_loss.1} parent=0 // pred_region
    _
  $region21: #{ghmc_loss.1} parent=0 // pred_fallthru
    _

</llo_original>
